<compile_context>
chip_gen: v7x
topology: tpu7x:2x2x1
jax: 0.10.0
libtpu: 0.0.40
codegen_flags: <defaults>
</compile_context>

<pallas_src>
import functools

import jax
import jax.numpy as jnp
from jax import lax
from jax.experimental import pallas as pl
from jax.experimental.pallas import tpu as pltpu


# ----------------------------------------------------------------------------
# Kernel
# ----------------------------------------------------------------------------
def _mixconv_kernel(x_ref, wd_ref, s2_ref, h2_ref, w1_ref, b1_ref, s3_ref, h3_ref,
                    o_ref, *, kernel_size, dilation):
    # x_ref : (TB, C, L)     input block (io dtype; upcast to f32 here)
    # wd_ref: (K, TB*C, 1)   depthwise weights, tap-major, pre-tiled over TB
    # s2/h2 : (TB*C, 1)      folded BatchNorm1d(C) eval-mode scale / shift
    # w1_ref: (O, C)         1x1 conv weight
    # b1_ref: (O, 1)         1x1 conv bias
    # s3/h3 : (O, 1)         folded BatchNorm1d(O) eval-mode scale / shift
    # o_ref : (TB, O, L)     output block (io dtype)
    TB, C, L = x_ref.shape
    K = kernel_size
    left = (dilation * (K - 1)) // 2          # PyTorch padding='same' convention

    # Whole elementwise chain in one 2D (TB*C, L) view; no per-tap reshapes.
    x2 = x_ref[...].astype(jnp.float32).reshape(TB * C, L)
    lane = lax.broadcasted_iota(jnp.int32, (1, L), 1)
    wd = wd_ref[...]                          # (K, TB*C, 1) f32

    # ---- depthwise 'same' conv: roll (XLU) + one-sided edge mask per tap ------
    acc = None
    for k in range(K):                        # K is static
        d = k * dilation - left               # y[l] += w[k] * x[l + d]
        if d == 0:
            xs = x2                           # center tap: no roll, no mask
        else:
            xs = pltpu.roll(x2, shift=(-d) % L, axis=1)
            if d > 0:
                xs = jnp.where(lane < L - d, xs, 0.0)   # one-sided mask
            else:
                xs = jnp.where(lane >= -d, xs, 0.0)
        term = wd[k] * xs                     # per-channel weight broadcast (VPU)
        acc = term if acc is None else acc + term

    # ---- ReLU -> BN2 (folded eval affine) -> residual add ----------------------
    y = jnp.maximum(acc, 0.0) * s2_ref[...] + h2_ref[...]
    z = y + x2                                # (TB*C, L)

    # ---- 1x1 conv (single batched MXU matmul) -> ReLU -> BN3 -------------------
    z3 = z.reshape(TB, C, L)                  # layout-free when C % 8 == 0
    w1b = jnp.broadcast_to(w1_ref[...][None], (TB,) + w1_ref.shape)   # (TB, O, C)
    u = jnp.einsum('boc,bcl->bol', w1b, z3,
                   preferred_element_type=jnp.float32)                # (TB, O, L)
    u = jnp.maximum(u + b1_ref[...][None], 0.0)
    o_ref[...] = (u * s3_ref[...][None] + h3_ref[...][None]).astype(o_ref.dtype)


# ----------------------------------------------------------------------------
# Wrapper
# ----------------------------------------------------------------------------
def _fold_bn(gamma, beta, mean, var, eps):
    scale = (gamma / jnp.sqrt(var + eps)).astype(jnp.float32)
    shift = (beta.astype(jnp.float32) - mean.astype(jnp.float32) * scale)
    return scale[:, None], shift[:, None]


def _tpu_physical_vmem_bytes():
    try:
        kind = jax.devices()[0].device_kind.lower()
    except Exception:
        kind = ""
    if "v7" in kind or "7x" in kind:
        return 64 << 20            # v7x: 64 MiB VMEM per TensorCore
    return 128 << 20               # v5e / v6e: 128 MiB


def _select_block_batch(B, C, O, Lp, io_bytes, budget_bytes):
    """Largest batch-block divisor of B that fits the VMEM budget (and keeps
    the grid length >= 2 when possible, for v7x TC sharding)."""
    def est(tb):
        io_blocks = 2 * tb * (C + O) * Lp * io_bytes   # double-buffered x / o
        f32_tmp = 6 * tb * max(C, O) * Lp * 4          # live f32 temporaries
        w1b = tb * O * C * 4                           # broadcast 1x1 weight
        return io_blocks + f32_tmp + w1b
    divs = [d for d in range(1, B + 1) if B % d == 0]
    fit = [d for d in divs if est(d) <= budget_bytes] or [1]
    multi = [d for d in fit if B // d >= 2]
    return max(multi) if multi else max(fit)


def mixconv_forward(x, params, *, kernel_size, dilation=1, eps=1e-5,
                    block_batch=None, io_dtype=None):
    """Mixconv forward (eval-mode BatchNorm). x: (B, C, L) NCL.

    params use the PyTorch layouts:
      wd : (C, 1, K)  depthwise Conv1d weight (groups=C, depth_multiplier=1)
      w1 : (O, C, 1)  1x1 Conv1d weight
      b1 : (O,)       1x1 Conv1d bias
      bn2_gamma/beta/mean/var : (C,)   bn3_gamma/beta/mean/var : (O,)
    """
    B, C, L = x.shape
    K = kernel_size
    O = params["w1"].shape[0]
    assert params["wd"].shape == (C, 1, K), "wd must be PyTorch (C,1,K) depthwise layout"
    assert params["w1"].shape == (O, C, 1), "w1 must be PyTorch (O,C,1) 1x1-conv layout"

    io_dtype = jnp.dtype(io_dtype) if io_dtype is not None else x.dtype
    x = x.astype(io_dtype)

    # Pad L to a lane-dense multiple of 128 (zero pad == 'same'-conv zeros beyond L).
    total_pad = dilation * (K - 1)
    Lp = max(L, total_pad + 1)
    Lp = ((Lp + 127) // 128) * 128
    if Lp != L:
        x = jnp.pad(x, ((0, 0), (0, 0), (0, Lp - L)))
    assert dilation * (K - 1) < Lp

    # Per-generation VMEM budgeting.
    phys_vmem = _tpu_physical_vmem_bytes()
    vmem_limit = (40 << 20) if phys_vmem <= (64 << 20) else (64 << 20)
    budget = vmem_limit // 2
    io_bytes = jnp.dtype(io_dtype).itemsize
    TB = (block_batch if block_batch is not None
          else _select_block_batch(B, C, O, Lp, io_bytes, budget))
    assert B % TB == 0

    # Parameters: f32, BN folded to scale/shift, pre-tiled over the batch block.
    wd = jnp.transpose(params["wd"].astype(jnp.float32), (2, 0, 1))   # (K, C, 1)
    wd = jnp.tile(wd, (1, TB, 1))                                     # (K, TB*C, 1)
    s2, h2 = _fold_bn(params["bn2_gamma"], params["bn2_beta"],
                      params["bn2_mean"], params["bn2_var"], eps)
    s2 = jnp.tile(s2, (TB, 1))
    h2 = jnp.tile(h2, (TB, 1))                                        # (TB*C, 1)
    w1 = params["w1"].astype(jnp.float32).reshape(O, C)
    b1 = params["b1"].astype(jnp.float32)[:, None]                    # (O, 1)
    s3, h3 = _fold_bn(params["bn3_gamma"], params["bn3_beta"],
                      params["bn3_mean"], params["bn3_var"], eps)

    kernel = functools.partial(_mixconv_kernel, kernel_size=K, dilation=dilation)

    def full(shape):
        return pl.BlockSpec(shape, lambda b, _n=len(shape): (0,) * _n)

    out = pl.pallas_call(
        kernel,
        out_shape=jax.ShapeDtypeStruct((B, O, Lp), io_dtype),
        grid_spec=pltpu.PrefetchScalarGridSpec(
            num_scalar_prefetch=0,
            grid=(B // TB,),
            in_specs=[
                pl.BlockSpec((TB, C, Lp), lambda b: (b, 0, 0)),   # x
                full((K, TB * C, 1)),                             # depthwise weight
                full((TB * C, 1)),                                # bn2 scale
                full((TB * C, 1)),                                # bn2 shift
                full((O, C)),                                     # 1x1 weight
                full((O, 1)),                                     # 1x1 bias
                full((O, 1)),                                     # bn3 scale
                full((O, 1)),                                     # bn3 shift
            ],
            out_specs=pl.BlockSpec((TB, O, Lp), lambda b: (b, 0, 0)),
        ),
        compiler_params=pltpu.CompilerParams(
            dimension_semantics=("parallel",),      # independent batch blocks
            vmem_limit_bytes=int(vmem_limit),       # raise v5e default / cap for v7x
        ),
    )(x, wd, s2, h2, w1, b1, s3, h3)

    return out[:, :, :L] if Lp != L else out


# ----------------------------------------------------------------------------
# Pure-JAX reference (identical math) and demo
# ----------------------------------------------------------------------------
def mixconv_reference(x, params, *, kernel_size, dilation=1, eps=1e-5):
    B, C, L = x.shape
    K = kernel_size
    O = params["w1"].shape[0]
    x = x.astype(jnp.float32)
    wd = jnp.transpose(params["wd"].astype(jnp.float32), (2, 0, 1))   # (K, C, 1)
    total = dilation * (K - 1)
    left = total // 2
    right = total - left
    xpad = jnp.pad(x, ((0, 0), (0, 0), (left, right)))
    y = sum(wd[k][None] * xpad[:, :, k * dilation:k * dilation + L] for k in range(K))
    s2, h2 = _fold_bn(params["bn2_gamma"], params["bn2_beta"],
                      params["bn2_mean"], params["bn2_var"], eps)
    y = jnp.maximum(y, 0.0) * s2[None] + h2[None]
    z = y + x
    w1 = params["w1"].astype(jnp.float32).reshape(O, C)
    u = jnp.einsum('oc,bcl->bol', w1, z) + params["b1"].astype(jnp.float32)[None, :, None]
    s3, h3 = _fold_bn(params["bn3_gamma"], params["bn3_beta"],
                      params["bn3_mean"], params["bn3_var"], eps)
    return jnp.maximum(u, 0.0) * s3[None] + h3[None]


def _make_params(key, C, O, K):
    ks = jax.random.split(key, 11)
    return dict(
        wd=jax.random.normal(ks[0], (C, 1, K), jnp.float32) * 0.2,
        w1=jax.random.normal(ks[1], (O, C, 1), jnp.float32) * 0.2,
        b1=jax.random.normal(ks[2], (O,), jnp.float32) * 0.1,
        bn2_gamma=1.0 + 0.1 * jax.random.normal(ks[3], (C,), jnp.float32),
        bn2_beta=0.1 * jax.random.normal(ks[4], (C,), jnp.float32),
        bn2_mean=0.1 * jax.random.normal(ks[5], (C,), jnp.float32),
        bn2_var=1.0 + 0.1 * jnp.abs(jax.random.normal(ks[6], (C,), jnp.float32)),
        bn3_gamma=1.0 + 0.1 * jax.random.normal(ks[7], (O,), jnp.float32),
        bn3_beta=0.1 * jax.random.normal(ks[8], (O,), jnp.float32),
        bn3_mean=0.1 * jax.random.normal(ks[9], (O,), jnp.float32),
        bn3_var=1.0 + 0.1 * jnp.abs(jax.random.normal(ks[10], (O,), jnp.float32)),
    )


if __name__ == "__main__":
    # Small shapes consistent with the module (dim_in channels, 'same' depthwise
    # conv, 1x1 conv to `channal` outputs). L=128 keeps stores lane-dense.
    B, C, O, L = 4, 16, 16, 128
    key = jax.random.PRNGKey(0)
    kx, kp, kp2 = jax.random.split(key, 3)
    x = jax.random.normal(kx, (B, C, L), jnp.float32)

    # --- case 1: odd K, f32 HBM I/O -----------------------------------------
    K = 7
    params = _make_params(kp, C, O, K)
    out = jax.block_until_ready(mixconv_forward(x, params, kernel_size=K))
    ref = mixconv_reference(x, params, kernel_size=K)
    assert out.shape == (B, O, L)
    assert jnp.allclose(out, ref, atol=1e-3, rtol=1e-3), "f32 mismatch (K=7)"

    # --- case 2: even K + dilation (locks PyTorch padding='same' convention) --
    K2, dil2 = 4, 2
    params2 = _make_params(kp2, C, O, K2)
    out2 = jax.block_until_ready(
        mixconv_forward(x, params2, kernel_size=K2, dilation=dil2))
    ref2 = mixconv_reference(x, params2, kernel_size=K2, dilation=dil2)
    assert jnp.allclose(out2, ref2, atol=1e-3, rtol=1e-3), "f32 mismatch (K=4,d=2)"

    # --- case 3: bf16 HBM I/O (v6e/v7x roofline lever; compute stays f32) -----
    x_bf = x.astype(jnp.bfloat16)
    out_bf = jax.block_until_ready(
        mixconv_forward(x_bf, params, kernel_size=K, io_dtype=jnp.bfloat16))
    ref_bf = mixconv_reference(x_bf.astype(jnp.float32), params, kernel_size=K)
    assert out_bf.dtype == jnp.bfloat16
    assert jnp.allclose(out_bf.astype(jnp.float32), ref_bf,
                        atol=3e-2, rtol=3e-2), "bf16 mismatch"

    print("KERNEL_OK")
</pallas_src>

<mosaic_0001>
module attributes {stable_mosaic.version = 11 : i64} {
  func.func @_mixconv_kernel(%arg0: i32, %arg1: memref<2x16x128xf32, #tpu.memory_space<vmem>>, %arg2: memref<7x32x1xf32, #tpu.memory_space<vmem>>, %arg3: memref<32x1xf32, #tpu.memory_space<vmem>>, %arg4: memref<32x1xf32, #tpu.memory_space<vmem>>, %arg5: memref<16x16xf32, #tpu.memory_space<vmem>>, %arg6: memref<16x1xf32, #tpu.memory_space<vmem>>, %arg7: memref<16x1xf32, #tpu.memory_space<vmem>>, %arg8: memref<16x1xf32, #tpu.memory_space<vmem>>, %arg9: memref<2x16x128xf32, #tpu.memory_space<vmem>>) attributes {dimension_semantics = [#tpu.dimension_semantics<parallel>], iteration_bounds = array<i64: 2>, scalar_prefetch = 0 : i64, scratch_operands = 0 : i64, tpu.core_type = #tpu.core_type<tc>, window_params = [{transform_indices = @transform_0, window_bounds = array<i64: 2, 16, 128>}, {pipeline_mode = #tpu.pipeline_mode<synchronous>, transform_indices = @transform_1, window_bounds = array<i64: 7, 32, 1>}, {pipeline_mode = #tpu.pipeline_mode<synchronous>, transform_indices = @transform_2, window_bounds = array<i64: 32, 1>}, {pipeline_mode = #tpu.pipeline_mode<synchronous>, transform_indices = @transform_3, window_bounds = array<i64: 32, 1>}, {pipeline_mode = #tpu.pipeline_mode<synchronous>, transform_indices = @transform_4, window_bounds = array<i64: 16, 16>}, {pipeline_mode = #tpu.pipeline_mode<synchronous>, transform_indices = @transform_5, window_bounds = array<i64: 16, 1>}, {pipeline_mode = #tpu.pipeline_mode<synchronous>, transform_indices = @transform_6, window_bounds = array<i64: 16, 1>}, {pipeline_mode = #tpu.pipeline_mode<synchronous>, transform_indices = @transform_7, window_bounds = array<i64: 16, 1>}, {transform_indices = @transform_8, window_bounds = array<i64: 2, 16, 128>}]} {
    %c0 = arith.constant 0 : index
    %c0_0 = arith.constant 0 : index
    %c0_1 = arith.constant 0 : index
    %0 = vector.load %arg1[%c0, %c0_0, %c0_1] : memref<2x16x128xf32, #tpu.memory_space<vmem>>, vector<2x16x128xf32>
    %1 = vector.shape_cast %0 : vector<2x16x128xf32> to vector<32x128xf32>
    %2 = tpu.iota {dimensions = array<i32: 1>} : vector<1x128xi32>
    %c0_2 = arith.constant 0 : index
    %c0_3 = arith.constant 0 : index
    %c0_4 = arith.constant 0 : index
    %3 = vector.load %arg2[%c0_2, %c0_3, %c0_4] : memref<7x32x1xf32, #tpu.memory_space<vmem>>, vector<7x32x1xf32>
    %c3_i32 = arith.constant 3 : i32
    %4 = tpu.dynamic_rotate %1 by %c3_i32 dim 1 : vector<32x128xf32>, i32 -> vector<32x128xf32>
    %c3_i32_5 = arith.constant 3 : i32
    %5 = vector.broadcast %c3_i32_5 : i32 to vector<1x128xi32>
    %6 = arith.cmpi sge, %2, %5 : vector<1x128xi32>
    %cst = arith.constant 0.000000e+00 : f32
    %7 = vector.shape_cast %6 : vector<1x128xi1> to vector<1x128xi1>
    %8 = vector.broadcast %7 : vector<1x128xi1> to vector<32x128xi1>
    %9 = vector.broadcast %cst : f32 to vector<32x128xf32>
    %10 = arith.select %8, %4, %9 : vector<32x128xi1>, vector<32x128xf32>
    %11 = vector.extract_strided_slice %3 {offsets = [0, 0, 0], sizes = [1, 32, 1], strides = [1, 1, 1]} : vector<7x32x1xf32> to vector<1x32x1xf32>
    %12 = vector.shape_cast %11 : vector<1x32x1xf32> to vector<32x1xf32>
    %13 = vector.broadcast %12 : vector<32x1xf32> to vector<32x128xf32>
    %14 = arith.mulf %13, %10 : vector<32x128xf32>
    %c2_i32 = arith.constant 2 : i32
    %15 = tpu.dynamic_rotate %1 by %c2_i32 dim 1 : vector<32x128xf32>, i32 -> vector<32x128xf32>
    %c2_i32_6 = arith.constant 2 : i32
    %16 = vector.broadcast %c2_i32_6 : i32 to vector<1x128xi32>
    %17 = arith.cmpi sge, %2, %16 : vector<1x128xi32>
    %cst_7 = arith.constant 0.000000e+00 : f32
    %18 = vector.shape_cast %17 : vector<1x128xi1> to vector<1x128xi1>
    %19 = vector.broadcast %18 : vector<1x128xi1> to vector<32x128xi1>
    %20 = vector.broadcast %cst_7 : f32 to vector<32x128xf32>
    %21 = arith.select %19, %15, %20 : vector<32x128xi1>, vector<32x128xf32>
    %22 = vector.extract_strided_slice %3 {offsets = [1, 0, 0], sizes = [1, 32, 1], strides = [1, 1, 1]} : vector<7x32x1xf32> to vector<1x32x1xf32>
    %23 = vector.shape_cast %22 : vector<1x32x1xf32> to vector<32x1xf32>
    %24 = vector.broadcast %23 : vector<32x1xf32> to vector<32x128xf32>
    %25 = arith.mulf %24, %21 : vector<32x128xf32>
    %26 = arith.addf %14, %25 : vector<32x128xf32>
    %c1_i32 = arith.constant 1 : i32
    %27 = tpu.dynamic_rotate %1 by %c1_i32 dim 1 : vector<32x128xf32>, i32 -> vector<32x128xf32>
    %c1_i32_8 = arith.constant 1 : i32
    %28 = vector.broadcast %c1_i32_8 : i32 to vector<1x128xi32>
    %29 = arith.cmpi sge, %2, %28 : vector<1x128xi32>
    %cst_9 = arith.constant 0.000000e+00 : f32
    %30 = vector.shape_cast %29 : vector<1x128xi1> to vector<1x128xi1>
    %31 = vector.broadcast %30 : vector<1x128xi1> to vector<32x128xi1>
    %32 = vector.broadcast %cst_9 : f32 to vector<32x128xf32>
    %33 = arith.select %31, %27, %32 : vector<32x128xi1>, vector<32x128xf32>
    %34 = vector.extract_strided_slice %3 {offsets = [2, 0, 0], sizes = [1, 32, 1], strides = [1, 1, 1]} : vector<7x32x1xf32> to vector<1x32x1xf32>
    %35 = vector.shape_cast %34 : vector<1x32x1xf32> to vector<32x1xf32>
    %36 = vector.broadcast %35 : vector<32x1xf32> to vector<32x128xf32>
    %37 = arith.mulf %36, %33 : vector<32x128xf32>
    %38 = arith.addf %26, %37 : vector<32x128xf32>
    %39 = vector.extract_strided_slice %3 {offsets = [3, 0, 0], sizes = [1, 32, 1], strides = [1, 1, 1]} : vector<7x32x1xf32> to vector<1x32x1xf32>
    %40 = vector.shape_cast %39 : vector<1x32x1xf32> to vector<32x1xf32>
    %41 = vector.broadcast %40 : vector<32x1xf32> to vector<32x128xf32>
    %42 = arith.mulf %41, %1 : vector<32x128xf32>
    %43 = arith.addf %38, %42 : vector<32x128xf32>
    %c127_i32 = arith.constant 127 : i32
    %44 = tpu.dynamic_rotate %1 by %c127_i32 dim 1 : vector<32x128xf32>, i32 -> vector<32x128xf32>
    %c127_i32_10 = arith.constant 127 : i32
    %45 = vector.broadcast %c127_i32_10 : i32 to vector<1x128xi32>
    %46 = arith.cmpi slt, %2, %45 : vector<1x128xi32>
    %cst_11 = arith.constant 0.000000e+00 : f32
    %47 = vector.shape_cast %46 : vector<1x128xi1> to vector<1x128xi1>
    %48 = vector.broadcast %47 : vector<1x128xi1> to vector<32x128xi1>
    %49 = vector.broadcast %cst_11 : f32 to vector<32x128xf32>
    %50 = arith.select %48, %44, %49 : vector<32x128xi1>, vector<32x128xf32>
    %51 = vector.extract_strided_slice %3 {offsets = [4, 0, 0], sizes = [1, 32, 1], strides = [1, 1, 1]} : vector<7x32x1xf32> to vector<1x32x1xf32>
    %52 = vector.shape_cast %51 : vector<1x32x1xf32> to vector<32x1xf32>
    %53 = vector.broadcast %52 : vector<32x1xf32> to vector<32x128xf32>
    %54 = arith.mulf %53, %50 : vector<32x128xf32>
    %55 = arith.addf %43, %54 : vector<32x128xf32>
    %c126_i32 = arith.constant 126 : i32
    %56 = tpu.dynamic_rotate %1 by %c126_i32 dim 1 : vector<32x128xf32>, i32 -> vector<32x128xf32>
    %c126_i32_12 = arith.constant 126 : i32
    %57 = vector.broadcast %c126_i32_12 : i32 to vector<1x128xi32>
    %58 = arith.cmpi slt, %2, %57 : vector<1x128xi32>
    %cst_13 = arith.constant 0.000000e+00 : f32
    %59 = vector.shape_cast %58 : vector<1x128xi1> to vector<1x128xi1>
    %60 = vector.broadcast %59 : vector<1x128xi1> to vector<32x128xi1>
    %61 = vector.broadcast %cst_13 : f32 to vector<32x128xf32>
    %62 = arith.select %60, %56, %61 : vector<32x128xi1>, vector<32x128xf32>
    %63 = vector.extract_strided_slice %3 {offsets = [5, 0, 0], sizes = [1, 32, 1], strides = [1, 1, 1]} : vector<7x32x1xf32> to vector<1x32x1xf32>
    %64 = vector.shape_cast %63 : vector<1x32x1xf32> to vector<32x1xf32>
    %65 = vector.broadcast %64 : vector<32x1xf32> to vector<32x128xf32>
    %66 = arith.mulf %65, %62 : vector<32x128xf32>
    %67 = arith.addf %55, %66 : vector<32x128xf32>
    %c125_i32 = arith.constant 125 : i32
    %68 = tpu.dynamic_rotate %1 by %c125_i32 dim 1 : vector<32x128xf32>, i32 -> vector<32x128xf32>
    %c125_i32_14 = arith.constant 125 : i32
    %69 = vector.broadcast %c125_i32_14 : i32 to vector<1x128xi32>
    %70 = arith.cmpi slt, %2, %69 : vector<1x128xi32>
    %cst_15 = arith.constant 0.000000e+00 : f32
    %71 = vector.shape_cast %70 : vector<1x128xi1> to vector<1x128xi1>
    %72 = vector.broadcast %71 : vector<1x128xi1> to vector<32x128xi1>
    %73 = vector.broadcast %cst_15 : f32 to vector<32x128xf32>
    %74 = arith.select %72, %68, %73 : vector<32x128xi1>, vector<32x128xf32>
    %75 = vector.extract_strided_slice %3 {offsets = [6, 0, 0], sizes = [1, 32, 1], strides = [1, 1, 1]} : vector<7x32x1xf32> to vector<1x32x1xf32>
    %76 = vector.shape_cast %75 : vector<1x32x1xf32> to vector<32x1xf32>
    %77 = vector.broadcast %76 : vector<32x1xf32> to vector<32x128xf32>
    %78 = arith.mulf %77, %74 : vector<32x128xf32>
    %79 = arith.addf %67, %78 : vector<32x128xf32>
    %cst_16 = arith.constant 0.000000e+00 : f32
    %80 = vector.broadcast %cst_16 : f32 to vector<32x128xf32>
    %81 = arith.maximumf %79, %80 : vector<32x128xf32>
    %c0_17 = arith.constant 0 : index
    %c0_18 = arith.constant 0 : index
    %82 = vector.load %arg3[%c0_17, %c0_18] : memref<32x1xf32, #tpu.memory_space<vmem>>, vector<32x1xf32>
    %83 = vector.broadcast %82 : vector<32x1xf32> to vector<32x128xf32>
    %84 = arith.mulf %81, %83 : vector<32x128xf32>
    %c0_19 = arith.constant 0 : index
    %c0_20 = arith.constant 0 : index
    %85 = vector.load %arg4[%c0_19, %c0_20] : memref<32x1xf32, #tpu.memory_space<vmem>>, vector<32x1xf32>
    %86 = vector.broadcast %85 : vector<32x1xf32> to vector<32x128xf32>
    %87 = arith.addf %84, %86 : vector<32x128xf32>
    %88 = arith.addf %87, %1 : vector<32x128xf32>
    %89 = vector.shape_cast %88 : vector<32x128xf32> to vector<2x16x128xf32>
    %c0_21 = arith.constant 0 : index
    %c0_22 = arith.constant 0 : index
    %90 = vector.load %arg5[%c0_21, %c0_22] : memref<16x16xf32, #tpu.memory_space<vmem>>, vector<16x16xf32>
    %91 = vector.shape_cast %90 : vector<16x16xf32> to vector<1x16x16xf32>
    %92 = vector.shape_cast %91 : vector<1x16x16xf32> to vector<1x16x16xf32>
    %93 = vector.broadcast %92 : vector<1x16x16xf32> to vector<2x16x16xf32>
    "tpu.trace_start"() <{level = 10 : i32, message = "boc,bcl->bol"}> : () -> ()
    %cst_23 = arith.constant dense<0.000000e+00> : vector<2x16x128xf32>
    %94 = tpu.matmul %93, %89, %cst_23 {dimension_numbers = #tpu.dot_dimension_numbers<[2], [1], [1], [2], [0, 0, 0, 1, 1, 2], [0], [0]>} : vector<2x16x16xf32>, vector<2x16x128xf32>, vector<2x16x128xf32> -> vector<2x16x128xf32>
    "tpu.trace_stop"() : () -> ()
    %c0_24 = arith.constant 0 : index
    %c0_25 = arith.constant 0 : index
    %95 = vector.load %arg6[%c0_24, %c0_25] : memref<16x1xf32, #tpu.memory_space<vmem>>, vector<16x1xf32>
    %96 = vector.shape_cast %95 : vector<16x1xf32> to vector<1x16x1xf32>
    %97 = vector.broadcast %96 : vector<1x16x1xf32> to vector<2x16x128xf32>
    %98 = arith.addf %94, %97 : vector<2x16x128xf32>
    %cst_26 = arith.constant 0.000000e+00 : f32
    %99 = vector.broadcast %cst_26 : f32 to vector<2x16x128xf32>
    %100 = arith.maximumf %98, %99 : vector<2x16x128xf32>
    %c0_27 = arith.constant 0 : index
    %c0_28 = arith.constant 0 : index
    %101 = vector.load %arg7[%c0_27, %c0_28] : memref<16x1xf32, #tpu.memory_space<vmem>>, vector<16x1xf32>
    %102 = vector.shape_cast %101 : vector<16x1xf32> to vector<1x16x1xf32>
    %103 = vector.broadcast %102 : vector<1x16x1xf32> to vector<2x16x128xf32>
    %104 = arith.mulf %100, %103 : vector<2x16x128xf32>
    %c0_29 = arith.constant 0 : index
    %c0_30 = arith.constant 0 : index
    %105 = vector.load %arg8[%c0_29, %c0_30] : memref<16x1xf32, #tpu.memory_space<vmem>>, vector<16x1xf32>
    %106 = vector.shape_cast %105 : vector<16x1xf32> to vector<1x16x1xf32>
    %107 = vector.broadcast %106 : vector<1x16x1xf32> to vector<2x16x128xf32>
    %108 = arith.addf %104, %107 : vector<2x16x128xf32>
    %c0_31 = arith.constant 0 : index
    %c0_32 = arith.constant 0 : index
    %c0_33 = arith.constant 0 : index
    %109 = vector.load %arg9[%c0_31, %c0_32, %c0_33] : memref<2x16x128xf32, #tpu.memory_space<vmem>>, vector<2x16x128xf32>
    tpu.vector_store %arg9[%c0_31, %c0_32, %c0_33], %108 {strides = array<i32>} : memref<2x16x128xf32, #tpu.memory_space<vmem>>, vector<2x16x128xf32>,
    return
  }
  func.func @transform_0(%arg0: i32) -> (i32, i32, i32) {
    %c0_i32 = arith.constant 0 : i32
    %c0_i32_0 = arith.constant 0 : i32
    %c0_i32_1 = arith.constant 0 : i32
    return %arg0, %c0_i32, %c0_i32_0 : i32, i32, i32
  }
  func.func @transform_1(%arg0: i32) -> (i32, i32, i32) {
    %c0_i32 = arith.constant 0 : i32
    %c0_i32_0 = arith.constant 0 : i32
    %c0_i32_1 = arith.constant 0 : i32
    %c0_i32_2 = arith.constant 0 : i32
    return %c0_i32, %c0_i32_0, %c0_i32_1 : i32, i32, i32
  }
  func.func @transform_2(%arg0: i32) -> (i32, i32) {
    %c0_i32 = arith.constant 0 : i32
    %c0_i32_0 = arith.constant 0 : i32
    %c0_i32_1 = arith.constant 0 : i32
    return %c0_i32, %c0_i32_0 : i32, i32
  }
  func.func @transform_3(%arg0: i32) -> (i32, i32) {
    %c0_i32 = arith.constant 0 : i32
    %c0_i32_0 = arith.constant 0 : i32
    %c0_i32_1 = arith.constant 0 : i32
    return %c0_i32, %c0_i32_0 : i32, i32
  }
  func.func @transform_4(%arg0: i32) -> (i32, i32) {
    %c0_i32 = arith.constant 0 : i32
    %c0_i32_0 = arith.constant 0 : i32
    %c0_i32_1 = arith.constant 0 : i32
    return %c0_i32, %c0_i32_0 : i32, i32
  }
  func.func @transform_5(%arg0: i32) -> (i32, i32) {
    %c0_i32 = arith.constant 0 : i32
    %c0_i32_0 = arith.constant 0 : i32
    %c0_i32_1 = arith.constant 0 : i32
    return %c0_i32, %c0_i32_0 : i32, i32
  }
  func.func @transform_6(%arg0: i32) -> (i32, i32) {
    %c0_i32 = arith.constant 0 : i32
    %c0_i32_0 = arith.constant 0 : i32
    %c0_i32_1 = arith.constant 0 : i32
    return %c0_i32, %c0_i32_0 : i32, i32
  }
  func.func @transform_7(%arg0: i32) -> (i32, i32) {
    %c0_i32 = arith.constant 0 : i32
    %c0_i32_0 = arith.constant 0 : i32
    %c0_i32_1 = arith.constant 0 : i32
    return %c0_i32, %c0_i32_0 : i32, i32
  }
  func.func @transform_8(%arg0: i32) -> (i32, i32, i32) {
    %c0_i32 = arith.constant 0 : i32
    %c0_i32_0 = arith.constant 0 : i32
    %c0_i32_1 = arith.constant 0 : i32
    return %arg0, %c0_i32, %c0_i32_0 : i32, i32, i32
  }
}

</mosaic_0001>

<llo_original>
// kernel: tpu_custom_call.1
$region0: #{tpu_custom_call.1}
  #allocation0 [shape = 'u32[]', space=smem, size = 0x4, offset = 0x4, fixed_abs, tag = 'smem constant byte address 0x4 - core index']
  #allocation1 [shape = 'u32[144,128]{1,0:T(1,128)}', space=vmem, size = 0x12000, scoped, tag = 'internal scratch']
  %s0 = inlined_call_operand.hbm [shape: f32[4,16,128], index: 0, kind: input, shape index: {}]
  %s1 = inlined_call_operand.hbm [shape: f32[7,32,1], index: 1, kind: input, shape index: {}]
  %s2 = inlined_call_operand.hbm [shape: f32[32,1], index: 2, kind: input, shape index: {}]
  %s3 = inlined_call_operand.hbm [shape: f32[32,1], index: 3, kind: input, shape index: {}]
  %s4 = inlined_call_operand.hbm [shape: f32[16,16], index: 4, kind: input, shape index: {}]
  %s5 = inlined_call_operand.hbm [shape: f32[16,1], index: 5, kind: input, shape index: {}]
  %s6 = inlined_call_operand.hbm [shape: f32[16,1], index: 6, kind: input, shape index: {}]
  %s7 = inlined_call_operand.hbm [shape: f32[16,1], index: 7, kind: input, shape index: {}]
  %s8 = inlined_call_operand.hbm [shape: f32[4,16,128], index: 8, kind: output, shape index: {}]
  %s9 = sld [smem:[#allocation0]]
  $region97: #{tpu_custom_call.1} parent=0
    _
  %s11 = ssub.s32 1, %s9
  %s12 = scalar_select 0, %s11, %s9
  $region1: #{tpu_custom_call.1} parent=0
    #allocation2 [shape = 'u8[32768]{0}', space=vmem, size = 0x8000, scoped, tag = 'input window, operand 0']
    #allocation3 [shape = 's32[2]{0}', space=sflag, size = 0x8, scoped, tag = 'scoped memory for tpu_custom_call.1']
    #allocation4 [shape = 's32[2]{0}', space=sflag, size = 0x8, scoped, tag = 'scoped memory for tpu_custom_call.1']
    #allocation5 [shape = 'u8[114688]{0}', space=vmem, size = 0x1c000, scoped, tag = 'input window, operand 1, single buffered']
    #allocation6 [shape = 's32[1]{0}', space=sflag, size = 0x4, scoped, tag = 'scoped memory for tpu_custom_call.1']
    #allocation7 [shape = 'u8[16384]{0}', space=vmem, size = 0x4000, scoped, tag = 'input window, operand 2, single buffered']
    #allocation8 [shape = 'u8[16384]{0}', space=vmem, size = 0x4000, scoped, tag = 'input window, operand 3, single buffered']
    #allocation9 [shape = 's32[1]{0}', space=sflag, size = 0x4, scoped, tag = 'scoped memory for tpu_custom_call.1']
    #allocation10 [shape = 'u8[8192]{0}', space=vmem, size = 0x2000, scoped, tag = 'input window, operand 4, single buffered']
    #allocation11 [shape = 'u8[8192]{0}', space=vmem, size = 0x2000, scoped, tag = 'input window, operand 5, single buffered']
    #allocation12 [shape = 's32[1]{0}', space=sflag, size = 0x4, scoped, tag = 'scoped memory for tpu_custom_call.1']
    #allocation13 [shape = 'u8[8192]{0}', space=vmem, size = 0x2000, scoped, tag = 'input window, operand 6, single buffered']
    #allocation14 [shape = 'u8[8192]{0}', space=vmem, size = 0x2000, scoped, tag = 'input window, operand 7, single buffered']
    #allocation15 [shape = 's32[1]{0}', space=sflag, size = 0x4, scoped, tag = 'scoped memory for tpu_custom_call.1']
    #allocation16 [shape = 'u8[32768]{0}', space=vmem, size = 0x8000, scoped, tag = 'output window, operand 0']
    %13 = vsyncpa [#allocation3], 0
    %s14 = scalar_lea.sflag [#allocation3], 1
    %15 = vsyncpa %s14, 0
    %16 = vsyncpa [#allocation6], 0
    %17 = vsyncpa [#allocation9], 0
    %18 = vsyncpa [#allocation12], 0
    %19 = vsyncpa [#allocation15], 0
    %20 = vsyncpa [#allocation4], 0
    %s21 = scalar_lea.sflag [#allocation4], 1
    %22 = vsyncpa %s21, 0
    loop: start=0, step=1, limit=4
    $region2: #{tpu_custom_call.1} parent=1 // loop_pre_header
      _
    $region3: #{tpu_custom_call.1} parent=1 // loop_header
      %s24 = sphi 0, %s28
      %p25 = scmp.ge.s32.totalorder %s24, 4
      %s34 = sphi 0, %s36
      %s37 = sphi 0, %s34
      %s38 = sphi 0, %s37
      %s54 = sphi 0, %s38
      %s58 = sphi 0, %s58
      %s60 = sphi 0, %s58
      %s61 = sphi 0, %s60
      %s75 = sphi 0, %s61
      %s79 = sphi 0, %s79
      %s81 = sphi 0, %s79
      %s82 = sphi 0, %s81
      %s96 = sphi 0, %s82
      %s100 = sphi 0, %s100
      %s102 = sphi 0, %s100
      %s103 = sphi 0, %s102
      %s117 = sphi 0, %s103
      %s121 = sphi 0, %s121
      %s123 = sphi 0, %s121
      %s124 = sphi 0, %s123
      %s138 = sphi 0, %s124
      %s142 = sphi 0, %s142
      %s144 = sphi 0, %s142
      %s145 = sphi 0, %s144
      %s159 = sphi 0, %s145
      %s163 = sphi 0, %s163
      %s165 = sphi 0, %s163
      %s166 = sphi 0, %s165
      %s180 = sphi 0, %s166
      %s184 = sphi 0, %s184
      %s186 = sphi 0, %s184
      %s187 = sphi 0, %s186
      %s201 = sphi 0, %s187
      %s207 = sphi 0, %s209
      %s210 = sphi 0, %s207
      %s211 = sphi 0, %s210
      %s227 = sphi 0, %s211
    $region4: #{tpu_custom_call.1} parent=1 // loop_header_branch
      %27 = sbr.rel (%p25) target = $region8
    $region5: #{tpu_custom_call.1} parent=1 // loop_body
      %s29 = ssub.s32 %s24, 1
      %s30 = ssub.s32 %s24, 2
      %s31 = sadd.s32 %s24, 1
      %s32 = ssub.s32 %s24, %s31
      %p33 = scmp.eq.s32.totalorder %s32, 0
      %s35 = sadd.s32 %s34, 1
      %s36 = scalar_select %p33, %s34, %s35
      %p39 = pneg %p33
      %p40 = scmp.eq.s32.totalorder %s24, 1
      %p41 = por %p39, %p40
      %p42 = scmp.ne.s32.totalorder %s34, %s37
      %p43 = scmp.eq.s32.totalorder %s24, 0
      %p44 = por %p42, %p43
      %p45 = scmp.ne.s32.totalorder %s34, %s37
      %p46 = scmp.eq.s32.totalorder %s29, 1
      %p47 = por %p45, %p46
      %p48 = scmp.ne.s32.totalorder %s37, %s38
      %p49 = scmp.eq.s32.totalorder %s29, 0
      %p50 = por %p48, %p49
      %p51 = scmp.ne.s32.totalorder %s37, %s38
      %p52 = scmp.eq.s32.totalorder %s30, 1
      %p53 = por %p51, %p52
      %p55 = scmp.ne.s32.totalorder %s38, %s54
      %p56 = scmp.eq.s32.totalorder %s30, 0
      %p57 = por %p55, %p56
      %s59 = sadd.s32 %s58, 1
      %p62 = scmp.eq.s32.totalorder %s24, 1
      %p63 = scmp.ne.s32.totalorder %s58, %s60
      %p64 = scmp.eq.s32.totalorder %s24, 0
      %p65 = por %p63, %p64
      %p66 = scmp.ne.s32.totalorder %s58, %s60
      %p67 = scmp.eq.s32.totalorder %s29, 1
      %p68 = por %p66, %p67
      %p69 = scmp.ne.s32.totalorder %s60, %s61
      %p70 = scmp.eq.s32.totalorder %s29, 0
      %p71 = por %p69, %p70
      %p72 = scmp.ne.s32.totalorder %s60, %s61
      %p73 = scmp.eq.s32.totalorder %s30, 1
      %p74 = por %p72, %p73
      %p76 = scmp.ne.s32.totalorder %s61, %s75
      %p77 = scmp.eq.s32.totalorder %s30, 0
      %p78 = por %p76, %p77
      %s80 = sadd.s32 %s79, 1
      %p83 = scmp.eq.s32.totalorder %s24, 1
      %p84 = scmp.ne.s32.totalorder %s79, %s81
      %p85 = scmp.eq.s32.totalorder %s24, 0
      %p86 = por %p84, %p85
      %p87 = scmp.ne.s32.totalorder %s79, %s81
      %p88 = scmp.eq.s32.totalorder %s29, 1
      %p89 = por %p87, %p88
      %p90 = scmp.ne.s32.totalorder %s81, %s82
      %p91 = scmp.eq.s32.totalorder %s29, 0
      %p92 = por %p90, %p91
      %p93 = scmp.ne.s32.totalorder %s81, %s82
      %p94 = scmp.eq.s32.totalorder %s30, 1
      %p95 = por %p93, %p94
      %p97 = scmp.ne.s32.totalorder %s82, %s96
      %p98 = scmp.eq.s32.totalorder %s30, 0
      %p99 = por %p97, %p98
      %s101 = sadd.s32 %s100, 1
      %p104 = scmp.eq.s32.totalorder %s24, 1
      %p105 = scmp.ne.s32.totalorder %s100, %s102
      %p106 = scmp.eq.s32.totalorder %s24, 0
      %p107 = por %p105, %p106
      %p108 = scmp.ne.s32.totalorder %s100, %s102
      %p109 = scmp.eq.s32.totalorder %s29, 1
      %p110 = por %p108, %p109
      %p111 = scmp.ne.s32.totalorder %s102, %s103
      %p112 = scmp.eq.s32.totalorder %s29, 0
      %p113 = por %p111, %p112
      %p114 = scmp.ne.s32.totalorder %s102, %s103
      %p115 = scmp.eq.s32.totalorder %s30, 1
      %p116 = por %p114, %p115
      %p118 = scmp.ne.s32.totalorder %s103, %s117
      %p119 = scmp.eq.s32.totalorder %s30, 0
      %p120 = por %p118, %p119
      %s122 = sadd.s32 %s121, 1
      %p125 = scmp.eq.s32.totalorder %s24, 1
      %p126 = scmp.ne.s32.totalorder %s121, %s123
      %p127 = scmp.eq.s32.totalorder %s24, 0
      %p128 = por %p126, %p127
      %p129 = scmp.ne.s32.totalorder %s121, %s123
      %p130 = scmp.eq.s32.totalorder %s29, 1
      %p131 = por %p129, %p130
      %p132 = scmp.ne.s32.totalorder %s123, %s124
      %p133 = scmp.eq.s32.totalorder %s29, 0
      %p134 = por %p132, %p133
      %p135 = scmp.ne.s32.totalorder %s123, %s124
      %p136 = scmp.eq.s32.totalorder %s30, 1
      %p137 = por %p135, %p136
      %p139 = scmp.ne.s32.totalorder %s124, %s138
      %p140 = scmp.eq.s32.totalorder %s30, 0
      %p141 = por %p139, %p140
      %s143 = sadd.s32 %s142, 1
      %p146 = scmp.eq.s32.totalorder %s24, 1
      %p147 = scmp.ne.s32.totalorder %s142, %s144
      %p148 = scmp.eq.s32.totalorder %s24, 0
      %p149 = por %p147, %p148
      %p150 = scmp.ne.s32.totalorder %s142, %s144
      %p151 = scmp.eq.s32.totalorder %s29, 1
      %p152 = por %p150, %p151
      %p153 = scmp.ne.s32.totalorder %s144, %s145
      %p154 = scmp.eq.s32.totalorder %s29, 0
      %p155 = por %p153, %p154
      %p156 = scmp.ne.s32.totalorder %s144, %s145
      %p157 = scmp.eq.s32.totalorder %s30, 1
      %p158 = por %p156, %p157
      %p160 = scmp.ne.s32.totalorder %s145, %s159
      %p161 = scmp.eq.s32.totalorder %s30, 0
      %p162 = por %p160, %p161
      %s164 = sadd.s32 %s163, 1
      %p167 = scmp.eq.s32.totalorder %s24, 1
      %p168 = scmp.ne.s32.totalorder %s163, %s165
      %p169 = scmp.eq.s32.totalorder %s24, 0
      %p170 = por %p168, %p169
      %p171 = scmp.ne.s32.totalorder %s163, %s165
      %p172 = scmp.eq.s32.totalorder %s29, 1
      %p173 = por %p171, %p172
      %p174 = scmp.ne.s32.totalorder %s165, %s166
      %p175 = scmp.eq.s32.totalorder %s29, 0
      %p176 = por %p174, %p175
      %p177 = scmp.ne.s32.totalorder %s165, %s166
      %p178 = scmp.eq.s32.totalorder %s30, 1
      %p179 = por %p177, %p178
      %p181 = scmp.ne.s32.totalorder %s166, %s180
      %p182 = scmp.eq.s32.totalorder %s30, 0
      %p183 = por %p181, %p182
      %s185 = sadd.s32 %s184, 1
      %p188 = scmp.eq.s32.totalorder %s24, 1
      %p189 = scmp.ne.s32.totalorder %s184, %s186
      %p190 = scmp.eq.s32.totalorder %s24, 0
      %p191 = por %p189, %p190
      %p192 = scmp.ne.s32.totalorder %s184, %s186
      %p193 = scmp.eq.s32.totalorder %s29, 1
      %p194 = por %p192, %p193
      %p195 = scmp.ne.s32.totalorder %s186, %s187
      %p196 = scmp.eq.s32.totalorder %s29, 0
      %p197 = por %p195, %p196
      %p198 = scmp.ne.s32.totalorder %s186, %s187
      %p199 = scmp.eq.s32.totalorder %s30, 1
      %p200 = por %p198, %p199
      %p202 = scmp.ne.s32.totalorder %s187, %s201
      %p203 = scmp.eq.s32.totalorder %s30, 0
      %p204 = por %p202, %p203
      %s205 = ssub.s32 %s24, %s31
      %p206 = scmp.eq.s32.totalorder %s205, 0
      %s208 = sadd.s32 %s207, 1
      %s209 = scalar_select %p206, %s207, %s208
      %p212 = pneg %p206
      %p213 = scmp.eq.s32.totalorder %s24, 1
      %p214 = por %p212, %p213
      %p215 = scmp.ne.s32.totalorder %s207, %s210
      %p216 = scmp.eq.s32.totalorder %s24, 0
      %p217 = por %p215, %p216
      %p218 = scmp.ne.s32.totalorder %s207, %s210
      %p219 = scmp.eq.s32.totalorder %s29, 1
      %p220 = por %p218, %p219
      %p221 = scmp.ne.s32.totalorder %s210, %s211
      %p222 = scmp.eq.s32.totalorder %s29, 0
      %p223 = por %p221, %p222
      %p224 = scmp.ne.s32.totalorder %s210, %s211
      %p225 = scmp.eq.s32.totalorder %s30, 1
      %p226 = por %p224, %p225
      %p228 = scmp.ne.s32.totalorder %s211, %s227
      %p229 = scmp.eq.s32.totalorder %s30, 0
      %p230 = por %p228, %p229
      %p231 = scmp.le.s32.totalorder 1, %s24
      %p232 = scmp.lt.s32.totalorder %s24, 3
      %p233 = pnand %p231, %p232
      %p234 = pneg %p233
      // Predicated region
      $region9: #{tpu_custom_call.1} parent=5 // pred_check
        _
      $region10: #{tpu_custom_call.1} parent=5 // pred_check_branch
        %236 = sbr.rel (%p233) target = $region12
      $region11: #{tpu_custom_call.1} parent=5 // pred_region
        %s237 = ssub.s32 %s24, 1
        // Predicated region
        $region13: #{tpu_custom_call.1} parent=11 // pred_check
          %p238 = pneg %p71
        $region14: #{tpu_custom_call.1} parent=11 // pred_check_branch
          %240 = sbr.rel (%p238) target = $region16
        $region15: #{tpu_custom_call.1} parent=11 // pred_region
          %s242 = ssub.s32 3584, 3584
          %243 = vsyncadd [#allocation6], %s242
          %s244 = sshll.u32 [#allocation5], 4
          %s245 = int_to_ptr.vmem [resolvable:$true] %s244
          %250 = dma.hbm_to_vmem [thread:$0]  %s1, 3584, %s245, [#allocation6], 128, 128, 8
        $region16: #{tpu_custom_call.1} parent=11 // pred_fallthru
          _
        // Predicated region
        $region17: #{tpu_custom_call.1} parent=11 // pred_check
          %p251 = pneg %p92
        $region18: #{tpu_custom_call.1} parent=11 // pred_check_branch
          %253 = sbr.rel (%p251) target = $region20
        $region19: #{tpu_custom_call.1} parent=11 // pred_region
          %s255 = ssub.s32 512, 512
          %256 = vsyncadd [#allocation6], %s255
          %s257 = sshll.u32 [#allocation7], 4
          %s258 = int_to_ptr.vmem [resolvable:$true] %s257
          %263 = dma.hbm_to_vmem [thread:$0]  %s2, 512, %s258, [#allocation6], 128, 128, 8
        $region20: #{tpu_custom_call.1} parent=11 // pred_fallthru
          _
        // Predicated region
        $region21: #{tpu_custom_call.1} parent=11 // pred_check
          %p264 = pneg %p113
        $region22: #{tpu_custom_call.1} parent=11 // pred_check_branch
          %266 = sbr.rel (%p264) target = $region24
        $region23: #{tpu_custom_call.1} parent=11 // pred_region
          %s268 = ssub.s32 512, 512
          %269 = vsyncadd [#allocation9], %s268
          %s270 = sshll.u32 [#allocation8], 4
          %s271 = int_to_ptr.vmem [resolvable:$true] %s270
          %276 = dma.hbm_to_vmem [thread:$0]  %s3, 512, %s271, [#allocation9], 128, 128, 8
        $region24: #{tpu_custom_call.1} parent=11 // pred_fallthru
          _
        // Predicated region
        $region25: #{tpu_custom_call.1} parent=11 // pred_check
          %p277 = pneg %p134
        $region26: #{tpu_custom_call.1} parent=11 // pred_check_branch
          %279 = sbr.rel (%p277) target = $region28
        $region27: #{tpu_custom_call.1} parent=11 // pred_region
          %s281 = ssub.s32 256, 256
          %282 = vsyncadd [#allocation9], %s281
          %s283 = sshll.u32 [#allocation10], 4
          %s284 = int_to_ptr.vmem [resolvable:$true] %s283
          %289 = dma.hbm_to_vmem [thread:$0]  %s4, 256, %s284, [#allocation9], 128, 128, 8
        $region28: #{tpu_custom_call.1} parent=11 // pred_fallthru
          _
        // Predicated region
        $region29: #{tpu_custom_call.1} parent=11 // pred_check
          %p290 = pneg %p155
        $region30: #{tpu_custom_call.1} parent=11 // pred_check_branch
          %292 = sbr.rel (%p290) target = $region32
        $region31: #{tpu_custom_call.1} parent=11 // pred_region
          %s294 = ssub.s32 256, 256
          %295 = vsyncadd [#allocation12], %s294
          %s296 = sshll.u32 [#allocation11], 4
          %s297 = int_to_ptr.vmem [resolvable:$true] %s296
          %302 = dma.hbm_to_vmem [thread:$0]  %s5, 256, %s297, [#allocation12], 128, 128, 8
        $region32: #{tpu_custom_call.1} parent=11 // pred_fallthru
          _
        // Predicated region
        $region33: #{tpu_custom_call.1} parent=11 // pred_check
          %p303 = pneg %p176
        $region34: #{tpu_custom_call.1} parent=11 // pred_check_branch
          %305 = sbr.rel (%p303) target = $region36
        $region35: #{tpu_custom_call.1} parent=11 // pred_region
          %s307 = ssub.s32 256, 256
          %308 = vsyncadd [#allocation12], %s307
          %s309 = sshll.u32 [#allocation13], 4
          %s310 = int_to_ptr.vmem [resolvable:$true] %s309
          %315 = dma.hbm_to_vmem [thread:$0]  %s6, 256, %s310, [#allocation12], 128, 128, 8
        $region36: #{tpu_custom_call.1} parent=11 // pred_fallthru
          _
        // Predicated region
        $region37: #{tpu_custom_call.1} parent=11 // pred_check
          %p316 = pneg %p197
        $region38: #{tpu_custom_call.1} parent=11 // pred_check_branch
          %318 = sbr.rel (%p316) target = $region40
        $region39: #{tpu_custom_call.1} parent=11 // pred_region
          %s320 = ssub.s32 256, 256
          %321 = vsyncadd [#allocation15], %s320
          %s322 = sshll.u32 [#allocation14], 4
          %s323 = int_to_ptr.vmem [resolvable:$true] %s322
          %328 = dma.hbm_to_vmem [thread:$0]  %s7, 256, %s323, [#allocation15], 128, 128, 8
        $region40: #{tpu_custom_call.1} parent=11 // pred_fallthru
          _
      $region12: #{tpu_custom_call.1} parent=5 // pred_fallthru
        _
      %p329 = scmp.lt.s32.totalorder %s24, 2
      // Predicated region
      $region41: #{tpu_custom_call.1} parent=5 // pred_check
        %p330 = pneg %p329
      $region42: #{tpu_custom_call.1} parent=5 // pred_check_branch
        %332 = sbr.rel (%p330) target = $region44
      $region43: #{tpu_custom_call.1} parent=5 // pred_region
        // Predicated region
        $region45: #{tpu_custom_call.1} parent=43 // pred_check
          %p333 = pneg %p44
        $region46: #{tpu_custom_call.1} parent=43 // pred_check_branch
          %335 = sbr.rel (%p333) target = $region48
        $region47: #{tpu_custom_call.1} parent=43 // pred_region
          %s336 = sand.u32 %s34, 1
          %s337 = scalar_lea.sflag [#allocation3], %s336
          %s338 = sand.u32 %s34, 1
          %s339 = smul.addr %s338, 32
          %s340 = scalar_lea.vmem [#allocation2], %s339
          %s341 = smul.u32 2, %s24
          %s343 = ssub.s32 512, 512
          %344 = vsyncadd %s337, %s343
          %s345 = smul.addr %s341, 2
          %s346 = smul.addr %s345, 128
          %s347 = scalar_lea.hbm %s0, %s346
          %s348 = sshll.u32 %s340, 4
          %s349 = int_to_ptr.vmem [resolvable:$true] %s348
          %354 = dma.hbm_to_vmem [thread:$0]  %s347, 512, %s349, %s337, 128, 128, 8
        $region48: #{tpu_custom_call.1} parent=43 // pred_fallthru
          _
      $region44: #{tpu_custom_call.1} parent=5 // pred_fallthru
        _
      %p355 = scmp.le.s32.totalorder 1, %s24
      %p356 = scmp.lt.s32.totalorder %s24, 3
      %p357 = pnand %p355, %p356
      %p358 = pneg %p357
      // Predicated region
      $region49: #{tpu_custom_call.1} parent=5 // pred_check
        _
      $region50: #{tpu_custom_call.1} parent=5 // pred_check_branch
        %360 = sbr.rel (%p357) target = $region52
      $region51: #{tpu_custom_call.1} parent=5 // pred_region
        %s361 = ssub.s32 %s24, 1
        %s362 = sand.u32 %s37, 1
        %s363 = scalar_lea.sflag [#allocation3], %s362
        %s364 = sand.u32 %s37, 1
        %s365 = smul.addr %s364, 32
        %s366 = scalar_lea.vmem [#allocation2], %s365
        // Predicated region
        $region53: #{tpu_custom_call.1} parent=51 // pred_check
          %p367 = pneg %p50
        $region54: #{tpu_custom_call.1} parent=51 // pred_check_branch
          %369 = sbr.rel (%p367) target = $region56
        $region55: #{tpu_custom_call.1} parent=51 // pred_region
          %370 = dma.done %s363, 512
        $region56: #{tpu_custom_call.1} parent=51 // pred_fallthru
          _
        // Predicated region
        $region57: #{tpu_custom_call.1} parent=51 // pred_check
          %p371 = pneg %p71
        $region58: #{tpu_custom_call.1} parent=51 // pred_check_branch
          %373 = sbr.rel (%p371) target = $region60
        $region59: #{tpu_custom_call.1} parent=51 // pred_region
          %374 = dma.done [#allocation6], 3584
        $region60: #{tpu_custom_call.1} parent=51 // pred_fallthru
          _
        // Predicated region
        $region61: #{tpu_custom_call.1} parent=51 // pred_check
          %p375 = pneg %p92
        $region62: #{tpu_custom_call.1} parent=51 // pred_check_branch
          %377 = sbr.rel (%p375) target = $region64
        $region63: #{tpu_custom_call.1} parent=51 // pred_region
          %378 = dma.done [#allocation6], 512
        $region64: #{tpu_custom_call.1} parent=51 // pred_fallthru
          _
        // Predicated region
        $region65: #{tpu_custom_call.1} parent=51 // pred_check
          %p379 = pneg %p113
        $region66: #{tpu_custom_call.1} parent=51 // pred_check_branch
          %381 = sbr.rel (%p379) target = $region68
        $region67: #{tpu_custom_call.1} parent=51 // pred_region
          %382 = dma.done [#allocation9], 512
        $region68: #{tpu_custom_call.1} parent=51 // pred_fallthru
          _
        // Predicated region
        $region69: #{tpu_custom_call.1} parent=51 // pred_check
          %p383 = pneg %p134
        $region70: #{tpu_custom_call.1} parent=51 // pred_check_branch
          %385 = sbr.rel (%p383) target = $region72
        $region71: #{tpu_custom_call.1} parent=51 // pred_region
          %386 = dma.done [#allocation9], 256
        $region72: #{tpu_custom_call.1} parent=51 // pred_fallthru
          _
        // Predicated region
        $region73: #{tpu_custom_call.1} parent=51 // pred_check
          %p387 = pneg %p155
        $region74: #{tpu_custom_call.1} parent=51 // pred_check_branch
          %389 = sbr.rel (%p387) target = $region76
        $region75: #{tpu_custom_call.1} parent=51 // pred_region
          %390 = dma.done [#allocation12], 256
        $region76: #{tpu_custom_call.1} parent=51 // pred_fallthru
          _
        // Predicated region
        $region77: #{tpu_custom_call.1} parent=51 // pred_check
          %p391 = pneg %p176
        $region78: #{tpu_custom_call.1} parent=51 // pred_check_branch
          %393 = sbr.rel (%p391) target = $region80
        $region79: #{tpu_custom_call.1} parent=51 // pred_region
          %394 = dma.done [#allocation12], 256
        $region80: #{tpu_custom_call.1} parent=51 // pred_fallthru
          _
        // Predicated region
        $region81: #{tpu_custom_call.1} parent=51 // pred_check
          %p395 = pneg %p197
        $region82: #{tpu_custom_call.1} parent=51 // pred_check_branch
          %397 = sbr.rel (%p395) target = $region84
        $region83: #{tpu_custom_call.1} parent=51 // pred_region
          %398 = dma.done [#allocation15], 256
        $region84: #{tpu_custom_call.1} parent=51 // pred_fallthru
          _
        %s399 = sand.u32 %s37, 1
        %s400 = scalar_lea.sflag [#allocation3], %s399
        %s401 = sand.u32 %s37, 1
        %s402 = smul.addr %s401, 32
        %s403 = scalar_lea.vmem [#allocation2], %s402
        %p404 = pneg %p50
        %p405 = pneg %p47
        %p406 = pneg %p71
        %p407 = pneg %p68
        %p408 = pneg %p92
        %p409 = pneg %p89
        %p410 = pneg %p113
        %p411 = pneg %p110
        %p412 = pneg %p134
        %p413 = pneg %p131
        %p414 = pneg %p155
        %p415 = pneg %p152
        %p416 = pneg %p176
        %p417 = pneg %p173
        %p418 = pneg %p197
        %p419 = pneg %p194
        %p420 = pneg %p223
        %p421 = pneg %p220
        %s422 = sand.u32 %s210, 1
        %s423 = scalar_lea.sflag [#allocation4], %s422
        %s424 = sand.u32 %s210, 1
        %s425 = smul.addr %s424, 32
        %s426 = scalar_lea.vmem [#allocation16], %s425
        %s427 = smul.u32 2, %s29
        %s428 = smul.u32 2, %s29
        %v429 = vld [vmem:[%s366] sm:$0xff]
        %v430 = vld [vmem:[%s366 + $0x8] sm:$0xff]
        %v431 = vld [vmem:[%s366 + $0x10] sm:$0xff]
        %v432 = vld [vmem:[%s366 + $0x18] sm:$0xff]
        %v433 = vlaneseq
        %v434 = vand.u32 %v433, 127
        %v435 = vld [vmem:[#allocation5] sm:$0xff]
        %v436 = vld [vmem:[#allocation5 + $0x8] sm:$0xff]
        %v437 = vld [vmem:[#allocation5 + $0x10] sm:$0xff]
        %v438 = vld [vmem:[#allocation5 + $0x18] sm:$0xff]
        %v439 = vld [vmem:[#allocation5 + $0x20] sm:$0xff]
        %v440 = vld [vmem:[#allocation5 + $0x28] sm:$0xff]
        %v441 = vld [vmem:[#allocation5 + $0x30] sm:$0xff]
        %v442 = vld [vmem:[#allocation5 + $0x38] sm:$0xff]
        %v443 = vld [vmem:[#allocation5 + $0x40] sm:$0xff]
        %v444 = vld [vmem:[#allocation5 + $0x48] sm:$0xff]
        %v445 = vld [vmem:[#allocation5 + $0x50] sm:$0xff]
        %v446 = vld [vmem:[#allocation5 + $0x58] sm:$0xff]
        %v447 = vld [vmem:[#allocation5 + $0x60] sm:$0xff]
        %v448 = vld [vmem:[#allocation5 + $0x68] sm:$0xff]
        %v449 = vld [vmem:[#allocation5 + $0x70] sm:$0xff]
        %v450 = vld [vmem:[#allocation5 + $0x78] sm:$0xff]
        %v451 = vld [vmem:[#allocation5 + $0x80] sm:$0xff]
        %v452 = vld [vmem:[#allocation5 + $0x88] sm:$0xff]
        %v453 = vld [vmem:[#allocation5 + $0x90] sm:$0xff]
        %v454 = vld [vmem:[#allocation5 + $0x98] sm:$0xff]
        %v455 = vld [vmem:[#allocation5 + $0xa0] sm:$0xff]
        %v456 = vld [vmem:[#allocation5 + $0xa8] sm:$0xff]
        %v457 = vld [vmem:[#allocation5 + $0xb0] sm:$0xff]
        %v458 = vld [vmem:[#allocation5 + $0xb8] sm:$0xff]
        %v459 = vld [vmem:[#allocation5 + $0xc0] sm:$0xff]
        %v460 = vld [vmem:[#allocation5 + $0xc8] sm:$0xff]
        %v461 = vld [vmem:[#allocation5 + $0xd0] sm:$0xff]
        %v462 = vld [vmem:[#allocation5 + $0xd8] sm:$0xff]
        %463 = vrot.lane.b32.xlu0 %v429, 3
        %v464 = vpop.permute.xlu0 %463
        %465 = vrot.lane.b32.xlu0 %v430, 3
        %v466 = vpop.permute.xlu0 %465
        %467 = vrot.lane.b32.xlu0 %v431, 3
        %v468 = vpop.permute.xlu0 %467
        %469 = vrot.lane.b32.xlu0 %v432, 3
        %v470 = vpop.permute.xlu0 %469
        %vm471 = vcmp.ge.s32.totalorder %v434, 3
        %v472 = vsel %vm471, 1, 0
        %vm473 = vcmp.eq.s32.totalorder %v472, 1
        %v474 = vsel %vm473, %v464, 0.0
        %v475 = vsel %vm473, %v466, 0.0
        %v476 = vsel %vm473, %v468, 0.0
        %v477 = vsel %vm473, %v470, 0.0
        %479 = vset.pattern.permute.xlu0 0
        %480 = vperm.xlu0 %479, %v435
        %v481 = vpop.permute.xlu0 %480
        %484 = vset.pattern.permute.xlu0 0
        %485 = vperm.xlu0 %484, %v436
        %v486 = vpop.permute.xlu0 %485
        %489 = vset.pattern.permute.xlu0 0
        %490 = vperm.xlu0 %489, %v437
        %v491 = vpop.permute.xlu0 %490
        %494 = vset.pattern.permute.xlu0 0
        %495 = vperm.xlu0 %494, %v438
        %v496 = vpop.permute.xlu0 %495
        %v498 = vmul.f32 %v481, %v474
        %v499 = vmul.f32 %v486, %v475
        %v500 = vmul.f32 %v491, %v476
        %v501 = vmul.f32 %v496, %v477
        %502 = vrot.lane.b32.xlu0 %v429, 2
        %v503 = vpop.permute.xlu0 %502
        %504 = vrot.lane.b32.xlu0 %v430, 2
        %v505 = vpop.permute.xlu0 %504
        %506 = vrot.lane.b32.xlu0 %v431, 2
        %v507 = vpop.permute.xlu0 %506
        %508 = vrot.lane.b32.xlu0 %v432, 2
        %v509 = vpop.permute.xlu0 %508
        %vm510 = vcmp.ge.s32.totalorder %v434, 2
        %v511 = vsel %vm510, 1, 0
        %vm512 = vcmp.eq.s32.totalorder %v511, 1
        %v513 = vsel %vm512, %v503, 0.0
        %v514 = vsel %vm512, %v505, 0.0
        %v515 = vsel %vm512, %v507, 0.0
        %v516 = vsel %vm512, %v509, 0.0
        %518 = vset.pattern.permute.xlu0 0
        %519 = vperm.xlu0 %518, %v439
        %v520 = vpop.permute.xlu0 %519
        %523 = vset.pattern.permute.xlu0 0
        %524 = vperm.xlu0 %523, %v440
        %v525 = vpop.permute.xlu0 %524
        %528 = vset.pattern.permute.xlu0 0
        %529 = vperm.xlu0 %528, %v441
        %v530 = vpop.permute.xlu0 %529
        %533 = vset.pattern.permute.xlu0 0
        %534 = vperm.xlu0 %533, %v442
        %v535 = vpop.permute.xlu0 %534
        %v537 = vmul.f32 %v520, %v513
        %v538 = vmul.f32 %v525, %v514
        %v539 = vmul.f32 %v530, %v515
        %v540 = vmul.f32 %v535, %v516
        %v541 = vadd.f32 %v498, %v537
        %v542 = vadd.f32 %v499, %v538
        %v543 = vadd.f32 %v500, %v539
        %v544 = vadd.f32 %v501, %v540
        %545 = vrot.lane.b32.xlu0 %v429, 1
        %v546 = vpop.permute.xlu0 %545
        %547 = vrot.lane.b32.xlu0 %v430, 1
        %v548 = vpop.permute.xlu0 %547
        %549 = vrot.lane.b32.xlu0 %v431, 1
        %v550 = vpop.permute.xlu0 %549
        %551 = vrot.lane.b32.xlu0 %v432, 1
        %v552 = vpop.permute.xlu0 %551
        %vm553 = vcmp.ge.s32.totalorder %v434, 1
        %v554 = vsel %vm553, 1, 0
        %vm555 = vcmp.eq.s32.totalorder %v554, 1
        %v556 = vsel %vm555, %v546, 0.0
        %v557 = vsel %vm555, %v548, 0.0
        %v558 = vsel %vm555, %v550, 0.0
        %v559 = vsel %vm555, %v552, 0.0
        %561 = vset.pattern.permute.xlu0 0
        %562 = vperm.xlu0 %561, %v443
        %v563 = vpop.permute.xlu0 %562
        %566 = vset.pattern.permute.xlu0 0
        %567 = vperm.xlu0 %566, %v444
        %v568 = vpop.permute.xlu0 %567
        %571 = vset.pattern.permute.xlu0 0
        %572 = vperm.xlu0 %571, %v445
        %v573 = vpop.permute.xlu0 %572
        %576 = vset.pattern.permute.xlu0 0
        %577 = vperm.xlu0 %576, %v446
        %v578 = vpop.permute.xlu0 %577
        %v580 = vmul.f32 %v563, %v556
        %v581 = vmul.f32 %v568, %v557
        %v582 = vmul.f32 %v573, %v558
        %v583 = vmul.f32 %v578, %v559
        %v584 = vadd.f32 %v541, %v580
        %v585 = vadd.f32 %v542, %v581
        %v586 = vadd.f32 %v543, %v582
        %v587 = vadd.f32 %v544, %v583
        %589 = vset.pattern.permute.xlu0 0
        %590 = vperm.xlu0 %589, %v447
        %v591 = vpop.permute.xlu0 %590
        %594 = vset.pattern.permute.xlu0 0
        %595 = vperm.xlu0 %594, %v448
        %v596 = vpop.permute.xlu0 %595
        %599 = vset.pattern.permute.xlu0 0
        %600 = vperm.xlu0 %599, %v449
        %v601 = vpop.permute.xlu0 %600
        %604 = vset.pattern.permute.xlu0 0
        %605 = vperm.xlu0 %604, %v450
        %v606 = vpop.permute.xlu0 %605
        %v608 = vmul.f32 %v591, %v429
        %v609 = vmul.f32 %v596, %v430
        %v610 = vmul.f32 %v601, %v431
        %v611 = vmul.f32 %v606, %v432
        %v612 = vadd.f32 %v584, %v608
        %v613 = vadd.f32 %v585, %v609
        %v614 = vadd.f32 %v586, %v610
        %v615 = vadd.f32 %v587, %v611
        %616 = vrot.lane.b32.xlu0 %v429, 127
        %v617 = vpop.permute.xlu0 %616
        %618 = vrot.lane.b32.xlu0 %v430, 127
        %v619 = vpop.permute.xlu0 %618
        %620 = vrot.lane.b32.xlu0 %v431, 127
        %v621 = vpop.permute.xlu0 %620
        %622 = vrot.lane.b32.xlu0 %v432, 127
        %v623 = vpop.permute.xlu0 %622
        %vm624 = vcmp.lt.s32.totalorder %v434, 127
        %v625 = vsel %vm624, 1, 0
        %vm626 = vcmp.eq.s32.totalorder %v625, 1
        %v627 = vsel %vm626, %v617, 0.0
        %v628 = vsel %vm626, %v619, 0.0
        %v629 = vsel %vm626, %v621, 0.0
        %v630 = vsel %vm626, %v623, 0.0
        %632 = vset.pattern.permute.xlu0 0
        %633 = vperm.xlu0 %632, %v451
        %v634 = vpop.permute.xlu0 %633
        %637 = vset.pattern.permute.xlu0 0
        %638 = vperm.xlu0 %637, %v452
        %v639 = vpop.permute.xlu0 %638
        %642 = vset.pattern.permute.xlu0 0
        %643 = vperm.xlu0 %642, %v453
        %v644 = vpop.permute.xlu0 %643
        %647 = vset.pattern.permute.xlu0 0
        %648 = vperm.xlu0 %647, %v454
        %v649 = vpop.permute.xlu0 %648
        %v651 = vmul.f32 %v634, %v627
        %v652 = vmul.f32 %v639, %v628
        %v653 = vmul.f32 %v644, %v629
        %v654 = vmul.f32 %v649, %v630
        %v655 = vadd.f32 %v612, %v651
        %v656 = vadd.f32 %v613, %v652
        %v657 = vadd.f32 %v614, %v653
        %v658 = vadd.f32 %v615, %v654
        %659 = vrot.lane.b32.xlu0 %v429, 126
        %v660 = vpop.permute.xlu0 %659
        %661 = vrot.lane.b32.xlu0 %v430, 126
        %v662 = vpop.permute.xlu0 %661
        %663 = vrot.lane.b32.xlu0 %v431, 126
        %v664 = vpop.permute.xlu0 %663
        %665 = vrot.lane.b32.xlu0 %v432, 126
        %v666 = vpop.permute.xlu0 %665
        %vm667 = vcmp.lt.s32.totalorder %v434, 126
        %v668 = vsel %vm667, 1, 0
        %vm669 = vcmp.eq.s32.totalorder %v668, 1
        %v670 = vsel %vm669, %v660, 0.0
        %v671 = vsel %vm669, %v662, 0.0
        %v672 = vsel %vm669, %v664, 0.0
        %v673 = vsel %vm669, %v666, 0.0
        %675 = vset.pattern.permute.xlu0 0
        %676 = vperm.xlu0 %675, %v455
        %v677 = vpop.permute.xlu0 %676
        %680 = vset.pattern.permute.xlu0 0
        %681 = vperm.xlu0 %680, %v456
        %v682 = vpop.permute.xlu0 %681
        %685 = vset.pattern.permute.xlu0 0
        %686 = vperm.xlu0 %685, %v457
        %v687 = vpop.permute.xlu0 %686
        %690 = vset.pattern.permute.xlu0 0
        %691 = vperm.xlu0 %690, %v458
        %v692 = vpop.permute.xlu0 %691
        %v694 = vmul.f32 %v677, %v670
        %v695 = vmul.f32 %v682, %v671
        %v696 = vmul.f32 %v687, %v672
        %v697 = vmul.f32 %v692, %v673
        %v698 = vadd.f32 %v655, %v694
        %v699 = vadd.f32 %v656, %v695
        %v700 = vadd.f32 %v657, %v696
        %v701 = vadd.f32 %v658, %v697
        %702 = vrot.lane.b32.xlu0 %v429, 125
        %v703 = vpop.permute.xlu0 %702
        %704 = vrot.lane.b32.xlu0 %v430, 125
        %v705 = vpop.permute.xlu0 %704
        %706 = vrot.lane.b32.xlu0 %v431, 125
        %v707 = vpop.permute.xlu0 %706
        %708 = vrot.lane.b32.xlu0 %v432, 125
        %v709 = vpop.permute.xlu0 %708
        %vm710 = vcmp.lt.s32.totalorder %v434, 125
        %v711 = vsel %vm710, 1, 0
        %vm712 = vcmp.eq.s32.totalorder %v711, 1
        %v713 = vsel %vm712, %v703, 0.0
        %v714 = vsel %vm712, %v705, 0.0
        %v715 = vsel %vm712, %v707, 0.0
        %v716 = vsel %vm712, %v709, 0.0
        %718 = vset.pattern.permute.xlu0 0
        %719 = vperm.xlu0 %718, %v459
        %v720 = vpop.permute.xlu0 %719
        %723 = vset.pattern.permute.xlu0 0
        %724 = vperm.xlu0 %723, %v460
        %v725 = vpop.permute.xlu0 %724
        %728 = vset.pattern.permute.xlu0 0
        %729 = vperm.xlu0 %728, %v461
        %v730 = vpop.permute.xlu0 %729
        %733 = vset.pattern.permute.xlu0 0
        %734 = vperm.xlu0 %733, %v462
        %v735 = vpop.permute.xlu0 %734
        %v737 = vmul.f32 %v720, %v713
        %v738 = vmul.f32 %v725, %v714
        %v739 = vmul.f32 %v730, %v715
        %v740 = vmul.f32 %v735, %v716
        %v741 = vadd.f32 %v698, %v737
        %v742 = vadd.f32 %v699, %v738
        %v743 = vadd.f32 %v700, %v739
        %v744 = vadd.f32 %v701, %v740
        %v745 = vmax.f32 %v741, 0.0
        %v746 = vmax.f32 %v742, 0.0
        %v747 = vmax.f32 %v743, 0.0
        %v748 = vmax.f32 %v744, 0.0
        %v749 = vld [vmem:[#allocation7] sm:$0xff]
        %v750 = vld [vmem:[#allocation7 + $0x8] sm:$0xff]
        %v751 = vld [vmem:[#allocation7 + $0x10] sm:$0xff]
        %v752 = vld [vmem:[#allocation7 + $0x18] sm:$0xff]
        %754 = vset.pattern.permute.xlu0 0
        %755 = vperm.xlu0 %754, %v749
        %v756 = vpop.permute.xlu0 %755
        %759 = vset.pattern.permute.xlu0 0
        %760 = vperm.xlu0 %759, %v750
        %v761 = vpop.permute.xlu0 %760
        %764 = vset.pattern.permute.xlu0 0
        %765 = vperm.xlu0 %764, %v751
        %v766 = vpop.permute.xlu0 %765
        %769 = vset.pattern.permute.xlu0 0
        %770 = vperm.xlu0 %769, %v752
        %v771 = vpop.permute.xlu0 %770
        %v773 = vmul.f32 %v745, %v756
        %v774 = vmul.f32 %v746, %v761
        %v775 = vmul.f32 %v747, %v766
        %v776 = vmul.f32 %v748, %v771
        %v777 = vld [vmem:[#allocation8] sm:$0xff]
        %v778 = vld [vmem:[#allocation8 + $0x8] sm:$0xff]
        %v779 = vld [vmem:[#allocation8 + $0x10] sm:$0xff]
        %v780 = vld [vmem:[#allocation8 + $0x18] sm:$0xff]
        %782 = vset.pattern.permute.xlu0 0
        %783 = vperm.xlu0 %782, %v777
        %v784 = vpop.permute.xlu0 %783
        %787 = vset.pattern.permute.xlu0 0
        %788 = vperm.xlu0 %787, %v778
        %v789 = vpop.permute.xlu0 %788
        %792 = vset.pattern.permute.xlu0 0
        %793 = vperm.xlu0 %792, %v779
        %v794 = vpop.permute.xlu0 %793
        %797 = vset.pattern.permute.xlu0 0
        %798 = vperm.xlu0 %797, %v780
        %v799 = vpop.permute.xlu0 %798
        %v801 = vadd.f32 %v773, %v784
        %v802 = vadd.f32 %v774, %v789
        %v803 = vadd.f32 %v775, %v794
        %v804 = vadd.f32 %v776, %v799
        %v805 = vadd.f32 %v801, %v429
        %v806 = vadd.f32 %v802, %v430
        %v807 = vadd.f32 %v803, %v431
        %v808 = vadd.f32 %v804, %v432
        %v809 = vld [vmem:[#allocation10] sm:$0xff]
        %v810 = vld [vmem:[#allocation10 + $0x8] sm:$0xff]
        %v811 = vld [vmem:[#allocation11] sm:$0xff]
        %v812 = vld [vmem:[#allocation11 + $0x8] sm:$0xff]
        %814 = vset.pattern.permute.xlu0 0
        %815 = vperm.xlu0 %814, %v811
        %v816 = vpop.permute.xlu0 %815
        %819 = vset.pattern.permute.xlu0 0
        %820 = vperm.xlu0 %819, %v812
        %v821 = vpop.permute.xlu0 %820
        %vm823 = vcmask 130048
        %v825 = vsel %vm823, %v809, 0
        %v828 = vsel %vm823, %v810, 0
        %830 = vmatprep.subr.mxu0 0.0
        %831 = vmatpush1.msra.mxu0 %v805
        %832 = vmatprep.subr.mxu0 0.0
        %833 = vmatpush1.msra.mxu0 %v806
        %834 = vmatprep.subr.mxu0 0.0
        %835 = vmatpush1.msra.mxu0 0.0
        %836 = vmatprep.subr.mxu0 0.0
        %837 = vmatpush1.msra.mxu0 0.0
        %838 = vmatprep.subr.mxu0 0.0
        %839 = vmatpush1.msra.mxu0 0.0
        %840 = vmatprep.subr.mxu0 0.0
        %841 = vmatpush1.msra.mxu0 0.0
        %842 = vmatprep.subr.mxu0 0.0
        %843 = vmatpush1.msra.mxu0 0.0
        %844 = vmatprep.subr.mxu0 0.0
        %845 = vmatpush1.msra.mxu0 0.0
        %846 = vmatprep.subr.mxu0 0.0
        %847 = vmatpush1.msra.mxu0 0.0
        %848 = vmatprep.subr.mxu0 0.0
        %849 = vmatpush1.msra.mxu0 0.0
        %850 = vmatprep.subr.mxu0 0.0
        %851 = vmatpush1.msra.mxu0 0.0
        %852 = vmatprep.subr.mxu0 0.0
        %853 = vmatpush1.msra.mxu0 0.0
        %854 = vmatprep.subr.mxu0 0.0
        %855 = vmatpush1.msra.mxu0 0.0
        %856 = vmatprep.subr.mxu0 0.0
        %857 = vmatpush1.msra.mxu0 0.0
        %858 = vmatprep.subr.mxu0 0.0
        %859 = vmatpush1.msra.mxu0 0.0
        %860 = vmatprep.subr.mxu0 0.0
        %861 = vmatpush1.msra.mxu0 0.0
        %862 = vmatprep.subr.mxu0 0.0
        %863 = vmatpush1.msra.mxu0 0.0
        %864 = vmatprep.subr.mxu0 0.0
        %865 = vmatpush1.msra.mxu0 0.0
        %866 = vmatprep.subr.mxu0 0.0
        %867 = vmatpush1.msra.mxu0 0.0
        %868 = vmatprep.subr.mxu0 0.0
        %869 = vmatpush1.msra.mxu0 0.0
        %870 = vmatprep.subr.mxu0 0.0
        %871 = vmatpush1.msra.mxu0 0.0
        %872 = vmatprep.subr.mxu0 0.0
        %873 = vmatpush1.msra.mxu0 0.0
        %874 = vmatprep.subr.mxu0 0.0
        %875 = vmatpush1.msra.mxu0 0.0
        %876 = vmatprep.subr.mxu0 0.0
        %877 = vmatpush1.msra.mxu0 0.0
        %878 = vmatprep.subr.mxu0 0.0
        %879 = vmatpush1.msra.mxu0 0.0
        %880 = vmatprep.subr.mxu0 0.0
        %881 = vmatpush1.msra.mxu0 0.0
        %882 = vmatprep.subr.mxu0 0.0
        %883 = vmatpush1.msra.mxu0 0.0
        %884 = vmatprep.subr.mxu0 0.0
        %885 = vmatpush1.msra.mxu0 0.0
        %886 = vmatprep.subr.mxu0 0.0
        %887 = vmatpush1.msra.mxu0 0.0
        %888 = vmatprep.subr.mxu0 0.0
        %889 = vmatpush1.msra.mxu0 0.0
        %890 = vmatprep.subr.mxu0 0.0
        %891 = vmatpush1.msra.mxu0 0.0
        %892 = vmatprep.subr.mxu0 0.0
        %893 = vmatpush1.msra.mxu0 0.0
        %894 = vmatprep.mubr.f32.mxu0 0.0
        %895 = vmatmul.mubr.f32.gmra.mrb[0].mxu0 %v825
        %v896 = vpop.f32.mrb[0].mxu0
        %v897 = vadd.f32 %v816, %v896
        %v898 = vpop.f32.mrb[0].mxu0
        %899 = vmatprep.mubr.f32.mxu0 0.0
        %900 = vmatmul.mubr.f32.gmra.mrb[0].mxu0 %v828
        %v901 = vpop.f32.mrb[0].mxu0
        %v902 = vadd.f32 %v821, %v901
        %v903 = vpop.f32.mrb[0].mxu0
        %904 = vdwg.mxu0
        %905 = vmatprep.subr.mxu0 0.0
        %906 = vmatpush1.msra.mxu0 %v807
        %907 = vmatprep.subr.mxu0 0.0
        %908 = vmatpush1.msra.mxu0 %v808
        %909 = vmatprep.subr.mxu0 0.0
        %910 = vmatpush1.msra.mxu0 0.0
        %911 = vmatprep.subr.mxu0 0.0
        %912 = vmatpush1.msra.mxu0 0.0
        %913 = vmatprep.subr.mxu0 0.0
        %914 = vmatpush1.msra.mxu0 0.0
        %915 = vmatprep.subr.mxu0 0.0
        %916 = vmatpush1.msra.mxu0 0.0
        %917 = vmatprep.subr.mxu0 0.0
        %918 = vmatpush1.msra.mxu0 0.0
        %919 = vmatprep.subr.mxu0 0.0
        %920 = vmatpush1.msra.mxu0 0.0
        %921 = vmatprep.subr.mxu0 0.0
        %922 = vmatpush1.msra.mxu0 0.0
        %923 = vmatprep.subr.mxu0 0.0
        %924 = vmatpush1.msra.mxu0 0.0
        %925 = vmatprep.subr.mxu0 0.0
        %926 = vmatpush1.msra.mxu0 0.0
        %927 = vmatprep.subr.mxu0 0.0
        %928 = vmatpush1.msra.mxu0 0.0
        %929 = vmatprep.subr.mxu0 0.0
        %930 = vmatpush1.msra.mxu0 0.0
        %931 = vmatprep.subr.mxu0 0.0
        %932 = vmatpush1.msra.mxu0 0.0
        %933 = vmatprep.subr.mxu0 0.0
        %934 = vmatpush1.msra.mxu0 0.0
        %935 = vmatprep.subr.mxu0 0.0
        %936 = vmatpush1.msra.mxu0 0.0
        %937 = vmatprep.subr.mxu0 0.0
        %938 = vmatpush1.msra.mxu0 0.0
        %939 = vmatprep.subr.mxu0 0.0
        %940 = vmatpush1.msra.mxu0 0.0
        %941 = vmatprep.subr.mxu0 0.0
        %942 = vmatpush1.msra.mxu0 0.0
        %943 = vmatprep.subr.mxu0 0.0
        %944 = vmatpush1.msra.mxu0 0.0
        %945 = vmatprep.subr.mxu0 0.0
        %946 = vmatpush1.msra.mxu0 0.0
        %947 = vmatprep.subr.mxu0 0.0
        %948 = vmatpush1.msra.mxu0 0.0
        %949 = vmatprep.subr.mxu0 0.0
        %950 = vmatpush1.msra.mxu0 0.0
        %951 = vmatprep.subr.mxu0 0.0
        %952 = vmatpush1.msra.mxu0 0.0
        %953 = vmatprep.subr.mxu0 0.0
        %954 = vmatpush1.msra.mxu0 0.0
        %955 = vmatprep.subr.mxu0 0.0
        %956 = vmatpush1.msra.mxu0 0.0
        %957 = vmatprep.subr.mxu0 0.0
        %958 = vmatpush1.msra.mxu0 0.0
        %959 = vmatprep.subr.mxu0 0.0
        %960 = vmatpush1.msra.mxu0 0.0
        %961 = vmatprep.subr.mxu0 0.0
        %962 = vmatpush1.msra.mxu0 0.0
        %963 = vmatprep.subr.mxu0 0.0
        %964 = vmatpush1.msra.mxu0 0.0
        %965 = vmatprep.subr.mxu0 0.0
        %966 = vmatpush1.msra.mxu0 0.0
        %967 = vmatprep.subr.mxu0 0.0
        %968 = vmatpush1.msra.mxu0 0.0
        %969 = vmatprep.mubr.f32.mxu0 0.0
        %970 = vmatmul.mubr.f32.gmra.mrb[0].mxu0 %v825
        %v971 = vpop.f32.mrb[0].mxu0
        %v972 = vadd.f32 %v816, %v971
        %v973 = vpop.f32.mrb[0].mxu0
        %974 = vmatprep.mubr.f32.mxu0 0.0
        %975 = vmatmul.mubr.f32.gmra.mrb[0].mxu0 %v828
        %v976 = vpop.f32.mrb[0].mxu0
        %v977 = vadd.f32 %v821, %v976
        %v978 = vpop.f32.mrb[0].mxu0
        %979 = vdwg.mxu0
        %v980 = vmax.f32 %v897, 0.0
        %v981 = vmax.f32 %v902, 0.0
        %v982 = vmax.f32 %v972, 0.0
        %v983 = vmax.f32 %v977, 0.0
        %v984 = vld [vmem:[#allocation13] sm:$0xff]
        %v985 = vld [vmem:[#allocation13 + $0x8] sm:$0xff]
        %987 = vset.pattern.permute.xlu0 0
        %988 = vperm.xlu0 %987, %v984
        %v989 = vpop.permute.xlu0 %988
        %992 = vset.pattern.permute.xlu0 0
        %993 = vperm.xlu0 %992, %v985
        %v994 = vpop.permute.xlu0 %993
        %v996 = vmul.f32 %v980, %v989
        %v997 = vmul.f32 %v981, %v994
        %v998 = vmul.f32 %v982, %v989
        %v999 = vmul.f32 %v983, %v994
        %v1000 = vld [vmem:[#allocation14] sm:$0xff]
        %v1001 = vld [vmem:[#allocation14 + $0x8] sm:$0xff]
        %1003 = vset.pattern.permute.xlu0 0
        %1004 = vperm.xlu0 %1003, %v1000
        %v1005 = vpop.permute.xlu0 %1004
        %1008 = vset.pattern.permute.xlu0 0
        %1009 = vperm.xlu0 %1008, %v1001
        %v1010 = vpop.permute.xlu0 %1009
        %v1012 = vadd.f32 %v996, %v1005
        %v1013 = vadd.f32 %v997, %v1010
        %v1014 = vadd.f32 %v998, %v1005
        %v1015 = vadd.f32 %v999, %v1010
        %1016 = vst [vmem:[%s426] sm:$0xff] %v1012
        %1017 = vst [vmem:[%s426 + $0x8] sm:$0xff] %v1013
        %1018 = vst [vmem:[%s426 + $0x10] sm:$0xff] %v1014
        %1019 = vst [vmem:[%s426 + $0x18] sm:$0xff] %v1015
        %s1020 = sand.u32 %s210, 1
        %s1021 = scalar_lea.sflag [#allocation4], %s1020
        %s1022 = sand.u32 %s210, 1
        %s1023 = smul.addr %s1022, 32
        %s1024 = scalar_lea.vmem [#allocation16], %s1023
        // Predicated region
        $region85: #{tpu_custom_call.1} parent=51 // pred_check
          %p1025 = pneg %p220
        $region86: #{tpu_custom_call.1} parent=51 // pred_check_branch
          %1027 = sbr.rel (%p1025) target = $region88
        $region87: #{tpu_custom_call.1} parent=51 // pred_region
          %s1028 = smul.u32 2, %s29
          %s1030 = ssub.s32 512, 512
          %1031 = vsyncadd %s1021, %s1030
          %s1032 = smul.addr %s1028, 2
          %s1033 = smul.addr %s1032, 128
          %s1034 = scalar_lea.hbm %s8, %s1033
          %s1035 = sshll.u32 %s1024, 4
          %s1036 = int_to_ptr.vmem [resolvable:$true] %s1035
          %1041 = dma.vmem_to_hbm [thread:$0]  %s1036, 512, %s1034, %s1021, 128, 128, 8
        $region88: #{tpu_custom_call.1} parent=51 // pred_fallthru
          _
      $region52: #{tpu_custom_call.1} parent=5 // pred_fallthru
        _
      %p1042 = scmp.le.s32.totalorder 2, %s24
      // Predicated region
      $region89: #{tpu_custom_call.1} parent=5 // pred_check
        %p1043 = pneg %p1042
      $region90: #{tpu_custom_call.1} parent=5 // pred_check_branch
        %1045 = sbr.rel (%p1043) target = $region92
      $region91: #{tpu_custom_call.1} parent=5 // pred_region
        %s1046 = ssub.s32 %s24, 2
        // Predicated region
        $region93: #{tpu_custom_call.1} parent=91 // pred_check
          %p1047 = pneg %p226
        $region94: #{tpu_custom_call.1} parent=91 // pred_check_branch
          %1049 = sbr.rel (%p1047) target = $region96
        $region95: #{tpu_custom_call.1} parent=91 // pred_region
          %s1050 = sand.u32 %s211, 1
          %s1051 = scalar_lea.sflag [#allocation4], %s1050
          %s1052 = sand.u32 %s211, 1
          %s1053 = smul.addr %s1052, 32
          %s1054 = scalar_lea.vmem [#allocation16], %s1053
          %1055 = dma.done %s1051, 512
        $region96: #{tpu_custom_call.1} parent=91 // pred_fallthru
          _
      $region92: #{tpu_custom_call.1} parent=5 // pred_fallthru
        _
    $region6: #{tpu_custom_call.1} parent=1 // loop_footer
      %s28 = sadd.s32 1, %s24
    $region7: #{tpu_custom_call.1} parent=1 // loop_footer_branch
      %23 = sbr.rel target = $region3
    $region8: #{tpu_custom_call.1} parent=1 // loop_exit
      _
    %1056 = vsyncpa [#allocation3], 1
    %s1057 = scalar_lea.sflag [#allocation3], 1
    %1058 = vsyncpa %s1057, 1
    %1059 = vsyncpa [#allocation6], 1
    %1060 = vsyncpa [#allocation9], 1
    %1061 = vsyncpa [#allocation12], 1
    %1062 = vsyncpa [#allocation15], 1
    %1063 = vsyncpa [#allocation4], 1
    %s1064 = scalar_lea.sflag [#allocation4], 1
    %1065 = vsyncpa %s1064, 1

</llo_original>
